<compile_context>
chip_gen: v7x
topology: tpu7x:2x2x1
jax: 0.10.0
libtpu: 0.0.40
codegen_flags: <defaults>
</compile_context>

<pallas_src>
import numpy as np
import jax
import jax.numpy as jnp
from jax.experimental import pallas as pl
from jax.experimental.pallas import tpu as pltpu

_LANE = 128
_SUBLANE = 8
_MAX_STRIPS = 64                        # cap on unrolled 128-lane strips per grid step
_TARGET_BLOCK_BYTES = 6 * 1024 * 1024   # per input block (x2 for double buffering)


def _cdiv(a, b):
    return -(-a // b)


def _round_up(x, m):
    return _cdiv(x, m) * m


def _round_down(x, m):
    return (x // m) * m


def _sublane_pack(dtype):
    # Dense vreg packing: 8 rows for 4-byte dtypes, 16 for 2-byte, 32 for 1-byte.
    return max(_SUBLANE, 32 // jnp.dtype(dtype).itemsize)


def _choose_tiling(nc, s, itemsize, pack):
    """Return (tile_nc, ts, n_nc, n_s) — no padding; ragged edges handled in-kernel."""
    # Reduction (lane) tile: wide but <= _MAX_STRIPS strips, rebalanced so the ragged
    # tail block stays as full as possible.
    ts = min(_round_up(s, _LANE), _MAX_STRIPS * _LANE)
    n_s = _cdiv(s, ts)
    ts = _round_up(_cdiv(s, n_s), _LANE)
    n_s = _cdiv(s, ts)

    # Row tile: fill the byte budget (taller/narrower blocks), dtype-aware packing.
    tile_nc = _round_down(_TARGET_BLOCK_BYTES // (ts * itemsize), pack)
    tile_nc = max(pack, min(tile_nc, _round_up(nc, pack)))
    n_nc = _cdiv(nc, tile_nc)
    tile_nc = _round_up(_cdiv(nc, n_nc), pack)       # rebalance rows across tiles
    n_nc = _cdiv(nc, tile_nc)

    # Keep >= 2 row-tiles on the parallel axis so both v7x TensorCores get work.
    if n_nc == 1 and nc >= 2 * pack:
        tile_nc = _round_up(_cdiv(nc, 2), pack)
        n_nc = _cdiv(nc, tile_nc)

    return tile_nc, ts, n_nc, n_s


def _make_kernel(tile_nc, ts, rem, min_val, acc_dtype):
    """rem = number of valid lanes in the LAST reduction block (1..ts)."""
    nstrips = ts // _LANE
    need_mask = rem < ts  # compile-time: only then does the last k-step contain garbage lanes

    def kernel(x_ref, o_ref, acc_ref):
        # x_ref: (tile_nc, ts) input block; o_ref: (tile_nc, 1); acc_ref: (tile_nc, 128)
        k = pl.program_id(1)
        last_k = pl.num_programs(1) - 1

        @pl.when(k == 0)
        def _init():
            acc_ref[...] = jnp.full(acc_ref.shape, min_val, acc_ref.dtype)

        if need_mask:
            not_last = k != last_k                                   # scalar, hoisted
            lane = jax.lax.broadcasted_iota(jnp.int32, (1, _LANE), 1)  # hoisted iota

        # Fold the block into a lane-wide partial max: pure VPU elementwise maxima over
        # statically addressed 128-lane strips (no cross-lane work per step).
        blk = None
        for s in range(nstrips):
            strip = x_ref[:, s * _LANE:(s + 1) * _LANE]
            if strip.dtype != acc_dtype:
                strip = strip.astype(acc_dtype)
            if need_mask and (s + 1) * _LANE > rem:
                # Only strips overlapping the ragged tail, and only on the last k-step,
                # get out-of-bounds lanes replaced by the dtype minimum.
                valid = jnp.logical_or(not_last, lane < (rem - s * _LANE))
                strip = jnp.where(valid, strip, min_val)
            blk = strip if blk is None else jnp.maximum(blk, strip)

        acc_ref[...] = jnp.maximum(acc_ref[...], blk)

        # Single cross-lane (XLU) reduce + narrow store only on the last reduction step.
        @pl.when(k == last_k)
        def _finalize():
            o_ref[...] = jnp.max(acc_ref[...], axis=-1, keepdims=True).astype(o_ref.dtype)

    return kernel


def global_max_pool(x):
    """x: (N, C, D, H, W) -> (N, C), max over all spatial dims (== F.max_pool3d full window)."""
    N, C = int(x.shape[0]), int(x.shape[1])
    S = int(np.prod(x.shape[2:]))
    NC = N * C

    dtype = x.dtype
    if jnp.issubdtype(dtype, jnp.floating):
        min_val = -float(np.inf)
    elif jnp.issubdtype(dtype, jnp.integer):
        min_val = int(jnp.iinfo(dtype).min)
    else:
        raise TypeError(f"unsupported dtype {dtype}")
    acc_dtype = dtype  # max is exact in the native dtype (incl. bf16/f16/int8)

    itemsize = jnp.dtype(dtype).itemsize
    pack = _sublane_pack(dtype)
    tile_nc, ts, n_nc, n_s = _choose_tiling(NC, S, itemsize, pack)
    rem = S - (n_s - 1) * ts  # valid lanes in the last reduction block, in (0, ts]

    xf = x.reshape(NC, S)  # contiguous view; no padding copy

    # VMEM budget computed from actual usage: 2x double-buffered input block, accumulator,
    # output block (x2), plus headroom for the strip-fold / mask temporaries.
    in_block_bytes = tile_nc * ts * itemsize
    acc_bytes = tile_nc * _LANE * jnp.dtype(acc_dtype).itemsize
    out_bytes = tile_nc * itemsize
    vmem_limit = 2 * in_block_bytes + 6 * acc_bytes + 2 * out_bytes + (6 << 20)
    vmem_limit = int(min(max(vmem_limit, 16 << 20), 40 << 20))

    out = pl.pallas_call(
        _make_kernel(tile_nc, ts, rem, min_val, acc_dtype),
        out_shape=jax.ShapeDtypeStruct((NC, 1), dtype),
        grid_spec=pltpu.PrefetchScalarGridSpec(
            num_scalar_prefetch=0,
            grid=(n_nc, n_s),  # (rows: parallel, reduction: arbitrary, last)
            in_specs=[pl.BlockSpec((tile_nc, ts), lambda i, k: (i, k))],
            out_specs=pl.BlockSpec((tile_nc, 1), lambda i, k: (i, 0)),
            scratch_shapes=[pltpu.VMEM((tile_nc, _LANE), acc_dtype)],
        ),
        compiler_params=pltpu.CompilerParams(
            dimension_semantics=("parallel", "arbitrary"),
            vmem_limit_bytes=vmem_limit,
        ),
    )(xf)

    return out.reshape(N, C)


if __name__ == "__main__":
    # Small NCDHW input: batch=2, channels=4, spatial=8x8x8 (divisible; no masking path)
    x = jax.random.normal(jax.random.PRNGKey(0), (2, 4, 8, 8, 8), dtype=jnp.float32)
    y = global_max_pool(x)
    jax.block_until_ready(y)
    y_ref = jnp.max(x.reshape(2, 4, -1), axis=-1)
    np.testing.assert_allclose(np.asarray(y), np.asarray(y_ref), rtol=0, atol=0)
    assert y.shape == (2, 4) and y.dtype == x.dtype

    # Ragged NC and spatial (7x7x7): exercises in-kernel lane masking, no jnp.pad copy
    x2 = jax.random.normal(jax.random.PRNGKey(1), (2, 3, 7, 7, 7), dtype=jnp.float32)
    y2 = global_max_pool(x2)
    jax.block_until_ready(y2)
    y2_ref = jnp.max(x2.reshape(2, 3, -1), axis=-1)
    np.testing.assert_allclose(np.asarray(y2), np.asarray(y2_ref), rtol=0, atol=0)
    assert y2.shape == (2, 3) and y2.dtype == x2.dtype

    # bf16, 22x22x22: multi-step reduction + ragged last step + dtype-aware packing,
    # native-dtype (bf16) accumulation.
    x3 = jax.random.normal(jax.random.PRNGKey(2), (2, 4, 22, 22, 22), dtype=jnp.bfloat16)
    y3 = global_max_pool(x3)
    jax.block_until_ready(y3)
    y3_ref = jnp.max(x3.reshape(2, 4, -1), axis=-1)
    np.testing.assert_array_equal(
        np.asarray(y3.astype(jnp.float32)), np.asarray(y3_ref.astype(jnp.float32)))
    assert y3.shape == (2, 4) and y3.dtype == x3.dtype

    print("KERNEL_OK")
</pallas_src>

<mosaic_0001>
module attributes {stable_mosaic.version = 11 : i64} {
  func.func @kernel(%arg0: i32, %arg1: i32, %arg2: memref<8x512xf32, #tpu.memory_space<vmem>>, %arg3: memref<8x1xf32, #tpu.memory_space<vmem>>, %arg4: memref<8x128xf32, #tpu.memory_space<vmem>>) attributes {dimension_semantics = [#tpu.dimension_semantics<parallel>, #tpu.dimension_semantics<arbitrary>], iteration_bounds = array<i64: 1, 1>, scalar_prefetch = 0 : i64, scratch_operands = 1 : i64, tpu.core_type = #tpu.core_type<tc>, window_params = [{transform_indices = @transform_0, window_bounds = array<i64: 8, 512>}, {transform_indices = @transform_1, window_bounds = array<i64: 8, 1>}]} {
    %c0_i32 = arith.constant 0 : i32
    %0 = arith.cmpi eq, %arg1, %c0_i32 : i32
    %1 = arith.extui %0 : i1 to i32
    %c0_i32_0 = arith.constant 0 : i32
    %2 = arith.cmpi ne, %1, %c0_i32_0 : i32
    scf.if %2 {
      %cst = arith.constant 0xFF800000 : f32
      %16 = vector.broadcast %cst : f32 to vector<8x128xf32>
      %c0_11 = arith.constant 0 : index
      %c0_12 = arith.constant 0 : index
      %17 = vector.load %arg4[%c0_11, %c0_12] : memref<8x128xf32, #tpu.memory_space<vmem>>, vector<8x128xf32>
      tpu.vector_store %arg4[%c0_11, %c0_12], %16 {strides = array<i32>} : memref<8x128xf32, #tpu.memory_space<vmem>>, vector<8x128xf32>,
    } else {
    }
    %c0 = arith.constant 0 : index
    %c0_1 = arith.constant 0 : index
    %3 = vector.load %arg2[%c0, %c0_1] : memref<8x512xf32, #tpu.memory_space<vmem>>, vector<8x128xf32>
    %c0_2 = arith.constant 0 : index
    %c128 = arith.constant 128 : index
    %4 = vector.load %arg2[%c0_2, %c128] : memref<8x512xf32, #tpu.memory_space<vmem>>, vector<8x128xf32>
    %5 = arith.maximumf %3, %4 : vector<8x128xf32>
    %c0_3 = arith.constant 0 : index
    %c256 = arith.constant 256 : index
    %6 = vector.load %arg2[%c0_3, %c256] : memref<8x512xf32, #tpu.memory_space<vmem>>, vector<8x128xf32>
    %7 = arith.maximumf %5, %6 : vector<8x128xf32>
    %c0_4 = arith.constant 0 : index
    %c384 = arith.constant 384 : index
    %8 = vector.load %arg2[%c0_4, %c384] : memref<8x512xf32, #tpu.memory_space<vmem>>, vector<8x128xf32>
    %9 = arith.maximumf %7, %8 : vector<8x128xf32>
    %c0_5 = arith.constant 0 : index
    %c0_6 = arith.constant 0 : index
    %10 = vector.load %arg4[%c0_5, %c0_6] : memref<8x128xf32, #tpu.memory_space<vmem>>, vector<8x128xf32>
    %11 = arith.maximumf %10, %9 : vector<8x128xf32>
    %c0_7 = arith.constant 0 : index
    %c0_8 = arith.constant 0 : index
    %12 = vector.load %arg4[%c0_7, %c0_8] : memref<8x128xf32, #tpu.memory_space<vmem>>, vector<8x128xf32>
    tpu.vector_store %arg4[%c0_7, %c0_8], %11 {strides = array<i32>} : memref<8x128xf32, #tpu.memory_space<vmem>>, vector<8x128xf32>,
    %c0_i32_9 = arith.constant 0 : i32
    %13 = arith.cmpi eq, %arg1, %c0_i32_9 : i32
    %14 = arith.extui %13 : i1 to i32
    %c0_i32_10 = arith.constant 0 : i32
    %15 = arith.cmpi ne, %14, %c0_i32_10 : i32
    scf.if %15 {
      %c0_11 = arith.constant 0 : index
      %c0_12 = arith.constant 0 : index
      %16 = vector.load %arg4[%c0_11, %c0_12] : memref<8x128xf32, #tpu.memory_space<vmem>>, vector<8x128xf32>
      %cst = arith.constant dense<0xFF800000> : vector<8xf32>
      %17 = vector.multi_reduction <maximumf>, %16, %cst [1] : vector<8x128xf32> to vector<8xf32>
      %18 = vector.shape_cast %17 : vector<8xf32> to vector<8x1xf32>
      %c0_13 = arith.constant 0 : index
      %c0_14 = arith.constant 0 : index
      %19 = vector.load %arg3[%c0_13, %c0_14] : memref<8x1xf32, #tpu.memory_space<vmem>>, vector<8x1xf32>
      tpu.vector_store %arg3[%c0_13, %c0_14], %18 {strides = array<i32>} : memref<8x1xf32, #tpu.memory_space<vmem>>, vector<8x1xf32>,
    } else {
    }
    return
  }
  func.func @transform_0(%arg0: i32, %arg1: i32) -> (i32, i32) {
    %c0_i32 = arith.constant 0 : i32
    return %arg0, %arg1 : i32, i32
  }
  func.func @transform_1(%arg0: i32, %arg1: i32) -> (i32, i32) {
    %c0_i32 = arith.constant 0 : i32
    %c0_i32_0 = arith.constant 0 : i32
    return %arg0, %c0_i32 : i32, i32
  }
}

</mosaic_0001>

<llo_original>
// kernel: tpu_custom_call.1
$region0: #{tpu_custom_call.1}
  #allocation0 [shape = 'u32[]', space=smem, size = 0x4, offset = 0x4, fixed_abs, tag = 'smem constant byte address 0x4 - core index']
  #allocation1 [shape = 'u32[144,128]{1,0:T(1,128)}', space=vmem, size = 0x12000, scoped, tag = 'internal scratch']
  #allocation2 [shape = 'f32[8,128]{1,0:T(8,128)}', space=vmem, size = 0x1000, scoped, tag = 'scratch operand']
  %s0 = inlined_call_operand.hbm [shape: f32[8,512], index: 0, kind: input, shape index: {}]
  %s1 = inlined_call_operand.vmem [shape: f32[8,1], index: 1, kind: output, shape index: {}]
  %s2 = sld [smem:[#allocation0]]
  $region26: #{tpu_custom_call.1} parent=0
    _
  %s4 = ssub.s32 1, %s2
  %s5 = scalar_select 0, %s4, %s2
  $region1: #{tpu_custom_call.1} parent=0
    #allocation3 [shape = 'u8[16384]{0}', space=vmem, size = 0x4000, scoped, tag = 'input window, operand 0, single buffered']
    #allocation4 [shape = 's32[1]{0}', space=sflag, size = 0x4, scoped, tag = 'scoped memory for tpu_custom_call.1']
    %6 = vsyncpa [#allocation4], 0
    // Predicated region
    $region2: #{tpu_custom_call.1} parent=1 // pred_check
      _
    $region3: #{tpu_custom_call.1} parent=1 // pred_check_branch
      %8 = sbr.rel (0) target = $region5
    $region4: #{tpu_custom_call.1} parent=1 // pred_region
      %s10 = ssub.s32 512, 512
      %11 = vsyncadd [#allocation4], %s10
      %s13 = sshll.u32 [#allocation3], 4
      %s14 = int_to_ptr.vmem [resolvable:$true] %s13
      %16 = dma.hbm_to_vmem [thread:$0]  %s0, 512, %s14, [#allocation4]
    $region5: #{tpu_custom_call.1} parent=1 // pred_fallthru
      _
    // Predicated region
    $region6: #{tpu_custom_call.1} parent=1 // pred_check
      _
    $region7: #{tpu_custom_call.1} parent=1 // pred_check_branch
      %18 = sbr.rel (0) target = $region9
    $region8: #{tpu_custom_call.1} parent=1 // pred_region
      %19 = dma.done [#allocation4], 512
    $region9: #{tpu_custom_call.1} parent=1 // pred_fallthru
      _
    %p20 = scmp.eq.s32.totalorder 0, 0
    // Predicated region
    $region10: #{tpu_custom_call.1} parent=1 // pred_check
      %p21 = pneg %p20
    $region11: #{tpu_custom_call.1} parent=1 // pred_check_branch
      %23 = sbr.rel (%p21) target = $region13
    $region12: #{tpu_custom_call.1} parent=1 // pred_region
      %24 = vst [vmem:[#allocation2] sm:$0xff] -inf
    $region13: #{tpu_custom_call.1} parent=1 // pred_fallthru
      _
    %v25 = vld [vmem:[#allocation3] sm:$0xff]
    %v26 = vld [vmem:[#allocation3 + $0x8] sm:$0xff]
    %v27 = vmax.f32 %v25, %v26
    %v28 = vld [vmem:[#allocation3 + $0x10] sm:$0xff]
    %v29 = vmax.f32 %v27, %v28
    %v30 = vld [vmem:[#allocation3 + $0x18] sm:$0xff]
    %v31 = vmax.f32 %v29, %v30
    %v32 = vld [vmem:[#allocation2] sm:$0xff]
    %v33 = vmax.f32 %v32, %v31
    %34 = vst [vmem:[#allocation2] sm:$0xff] %v33
    // Predicated region
    $region14: #{tpu_custom_call.1} parent=1 // pred_check
      %p35 = pneg %p20
    $region15: #{tpu_custom_call.1} parent=1 // pred_check_branch
      %37 = sbr.rel (%p35) target = $region17
    $region16: #{tpu_custom_call.1} parent=1 // pred_region
      %v38 = vld [vmem:[#allocation2] sm:$0xff]
      %39 = vmax.xlane.f32.xlu0 %v38
      %v40 = vpop.xlane.xlu0 %39
      %vm41 = vcmask 7168
      %42 = vst.msk [vmem:[%s1] sm:$0xff] %vm41, %v40
    $region17: #{tpu_custom_call.1} parent=1 // pred_fallthru
      _
    // Predicated region
    $region18: #{tpu_custom_call.1} parent=1 // pred_check
      _
    $region19: #{tpu_custom_call.1} parent=1 // pred_check_branch
      %44 = sbr.rel (0) target = $region21
    $region20: #{tpu_custom_call.1} parent=1 // pred_region
      _
    $region21: #{tpu_custom_call.1} parent=1 // pred_fallthru
      _
    // Predicated region
    $region22: #{tpu_custom_call.1} parent=1 // pred_check
      _
    $region23: #{tpu_custom_call.1} parent=1 // pred_check_branch
      %46 = sbr.rel (0) target = $region25
    $region24: #{tpu_custom_call.1} parent=1 // pred_region
      _
    $region25: #{tpu_custom_call.1} parent=1 // pred_fallthru
      _
    %47 = vsyncpa [#allocation4], 1

</llo_original>
